<compile_context>
chip_gen: v7x
topology: tpu7x:2x2x1
jax: 0.10.0
libtpu: 0.0.40
codegen_flags: <defaults>
</compile_context>

<pallas_src>
import functools

import jax
import jax.numpy as jnp
from jax.experimental import pallas as pl
from jax.experimental.pallas import tpu as pltpu


def _meta_cond_kernel(feat_ref, tid_ref, w_feat_ref, cond_tbl_ref, o_ref):
    # feat_ref:     [TB, task_dim]           (f32 activations)
    # tid_ref:      [TB, 1]                  (int32, pre-clamped)
    # w_feat_ref:   [task_dim, task_dim]     (bf16/f32), pre-transposed W_feat.T
    # cond_tbl_ref: [8, task_dim]            (bf16/f32), = embed @ W_cond.T + b, padded
    # o_ref:        [TB, task_dim]           (f32)
    w_dtype = w_feat_ref.dtype
    x = feat_ref[...].astype(w_dtype)                      # no-op for f32 weights
    acc = jnp.dot(x, w_feat_ref[...], preferred_element_type=jnp.float32)

    # Conditioning add as a one-hot MXU dot (K = 8 padded rows), instead of a
    # per-task masked mul+add loop on the VALU.
    tid = tid_ref[...]                                     # [TB, 1] int32
    n_pad = cond_tbl_ref.shape[0]                          # 8
    iota = jax.lax.broadcasted_iota(jnp.int32, (tid.shape[0], n_pad), 1)
    one_hot = (tid == iota).astype(w_dtype)                # [TB, 8] exact in bf16
    acc = acc + jnp.dot(one_hot, cond_tbl_ref[...],
                        preferred_element_type=jnp.float32)

    o_ref[...] = jnp.maximum(acc, 0.0).astype(o_ref.dtype)


def prepare_meta_conditioning_params(embed_table, fuse_w, fuse_b,
                                     weight_dtype=jnp.bfloat16):
    """One-time parameter preparation (hoisted out of the per-call path).

    embed_table : [num_tasks, cond_dim] f32   (nn.Embedding weight)
    fuse_w      : [task_dim, task_dim+cond_dim] f32  (nn.Linear weight, [out, in])
    fuse_b      : [task_dim] f32
    returns (w_feat [task_dim, task_dim]  in weight_dtype,
             cond_table_padded [8*, task_dim] in weight_dtype,
             num_tasks)
    """
    task_dim = fuse_w.shape[0]
    num_tasks = embed_table.shape[0]
    # Pre-transposed feature weight so the kernel does a plain [B,K]@[K,N] matmul.
    w_feat = jnp.asarray(fuse_w[:, :task_dim].T, dtype=weight_dtype)
    # Fold embedding, W_cond and bias into one tiny additive table.
    cond_table = embed_table @ fuse_w[:, task_dim:].T + fuse_b[None, :]
    # Pad to a multiple of 8 rows (sublane alignment) for the one-hot MXU dot.
    n_pad = max(8, ((num_tasks + 7) // 8) * 8)
    cond_table = jnp.pad(cond_table, ((0, n_pad - num_tasks), (0, 0)))
    cond_table = cond_table.astype(weight_dtype)
    return w_feat, cond_table, num_tasks


def meta_conditioning_forward(task_feat, task_id, params, *, block_b=512):
    """
    task_feat : [B, task_dim] f32
    task_id   : python int / int32 scalar / int32 [B]
    params    : output of prepare_meta_conditioning_params
    returns   : [B, task_dim] f32
    """
    w_feat, cond_tbl, num_tasks = params
    B, task_dim = task_feat.shape
    n_pad = cond_tbl.shape[0]

    task_id = jnp.asarray(task_id, dtype=jnp.int32)
    if task_id.ndim == 0:
        task_id = jnp.broadcast_to(task_id, (B,))
    # Clamp so an out-of-range id can never silently drop the folded bias.
    task_id = jnp.clip(task_id, 0, num_tasks - 1).reshape(B, 1)

    # Batch tiling: single block for small B, otherwise TB-row stream with
    # resident weights.  Pad B up to a multiple of TB (padded rows sliced off).
    if B <= block_b:
        tb, bp = B, B
    else:
        tb = block_b
        bp = pl.cdiv(B, tb) * tb
    if bp != B:
        task_feat = jnp.pad(task_feat, ((0, bp - B), (0, 0)))
        task_id = jnp.pad(task_id, ((0, bp - B), (0, 0)))

    grid = (bp // tb,)
    itemsize = jnp.dtype(task_feat.dtype).itemsize
    w_itemsize = jnp.dtype(w_feat.dtype).itemsize
    cost = pl.CostEstimate(
        flops=2 * bp * task_dim * (task_dim + n_pad),
        transcendentals=0,
        bytes_accessed=(2 * bp * task_dim * itemsize            # feat in + out
                        + bp * 4                                 # task_id
                        + task_dim * task_dim * w_itemsize       # w_feat (resident)
                        + n_pad * task_dim * w_itemsize))        # cond table

    out = pl.pallas_call(
        _meta_cond_kernel,
        out_shape=jax.ShapeDtypeStruct((bp, task_dim), task_feat.dtype),
        grid=grid,
        in_specs=[
            pl.BlockSpec((tb, task_dim), lambda i: (i, 0)),      # feat (streams)
            pl.BlockSpec((tb, 1), lambda i: (i, 0)),             # task_id (streams)
            pl.BlockSpec((task_dim, task_dim), lambda i: (0, 0)),  # w_feat (resident)
            pl.BlockSpec((n_pad, task_dim), lambda i: (0, 0)),     # cond table (resident)
        ],
        out_specs=pl.BlockSpec((tb, task_dim), lambda i: (i, 0)),
        compiler_params=pltpu.CompilerParams(
            dimension_semantics=("parallel",)),                  # both TCs on v7x
        cost_estimate=cost,
    )(task_feat, task_id, w_feat, cond_tbl)
    # TODO(synk): optional SMEM scalar-prefetch fast path for a uniform
    # (scalar) task_id would remove the [TB,1] tid buffer entirely.
    return out[:B] if bp != B else out


def reference_forward(task_feat, task_id, embed_table, fuse_w, fuse_b):
    B = task_feat.shape[0]
    task_id = jnp.asarray(task_id, dtype=jnp.int32)
    if task_id.ndim == 0:
        task_id = jnp.broadcast_to(task_id, (B,))
    cond_vec = jnp.take(embed_table, task_id, axis=0)
    x = jnp.concatenate([task_feat, cond_vec], axis=-1)
    y = x @ fuse_w.T + fuse_b
    return jnp.maximum(y, 0.0)


if __name__ == "__main__":
    # Shapes consistent with the module defaults.
    B = 8
    task_dim = 256
    cond_dim = 64
    num_tasks = 5

    key = jax.random.PRNGKey(0)
    k_feat, k_embed, k_w, k_b, k_id = jax.random.split(key, 5)

    task_feat = jax.random.normal(k_feat, (B, task_dim), dtype=jnp.float32)
    embed_table = jax.random.normal(k_embed, (num_tasks, cond_dim),
                                    dtype=jnp.float32)
    fuse_w = jax.random.normal(k_w, (task_dim, task_dim + cond_dim),
                               dtype=jnp.float32) * 0.05
    fuse_b = jax.random.normal(k_b, (task_dim,), dtype=jnp.float32) * 0.05
    task_id = jax.random.randint(k_id, (B,), 0, num_tasks, dtype=jnp.int32)

    forward = jax.jit(meta_conditioning_forward)
    ref = reference_forward(task_feat, task_id, embed_table, fuse_w, fuse_b)

    # --- default bf16 weights (native MXU path, halved weight bytes) ---
    params_bf16 = prepare_meta_conditioning_params(embed_table, fuse_w, fuse_b)
    out_bf16 = jax.block_until_ready(forward(task_feat, task_id, params_bf16))
    assert out_bf16.shape == (B, task_dim)
    assert jnp.allclose(out_bf16, ref, atol=5e-2, rtol=5e-2)

    # --- f32 weights: tight tolerance against the pure-JAX reference ---
    params_f32 = prepare_meta_conditioning_params(embed_table, fuse_w, fuse_b,
                                                  weight_dtype=jnp.float32)
    out_f32 = jax.block_until_ready(forward(task_feat, task_id, params_f32))
    assert jnp.allclose(out_f32, ref, atol=1e-4, rtol=1e-4)

    # --- scalar (int) task_id path, like the PyTorch default task_id=0 ---
    out_scalar = jax.block_until_ready(forward(task_feat, 0, params_f32))
    ref_scalar = reference_forward(task_feat, 0, embed_table, fuse_w, fuse_b)
    assert jnp.allclose(out_scalar, ref_scalar, atol=1e-4, rtol=1e-4)

    # --- exercise the B-grid + padding path at a small, fast size ---
    B2 = 20
    k2_feat, k2_id = jax.random.split(jax.random.PRNGKey(1), 2)
    feat2 = jax.random.normal(k2_feat, (B2, task_dim), dtype=jnp.float32)
    tid2 = jax.random.randint(k2_id, (B2,), 0, num_tasks, dtype=jnp.int32)
    forward_grid = jax.jit(
        functools.partial(meta_conditioning_forward, block_b=8))
    out2 = jax.block_until_ready(forward_grid(feat2, tid2, params_f32))
    ref2 = reference_forward(feat2, tid2, embed_table, fuse_w, fuse_b)
    assert out2.shape == (B2, task_dim)
    assert jnp.allclose(out2, ref2, atol=1e-4, rtol=1e-4)

    print("KERNEL_OK")
</pallas_src>

<mosaic_0001>
module attributes {stable_mosaic.version = 11 : i64} {
  func.func @_meta_cond_kernel(%arg0: i32, %arg1: memref<8x256xf32, #tpu.memory_space<vmem>>, %arg2: memref<8x1xi32, #tpu.memory_space<vmem>>, %arg3: memref<256x256xbf16, #tpu.memory_space<vmem>>, %arg4: memref<8x256xbf16, #tpu.memory_space<vmem>>, %arg5: memref<8x256xf32, #tpu.memory_space<vmem>>) attributes {dimension_semantics = [#tpu.dimension_semantics<parallel>], iteration_bounds = array<i64: 1>, scalar_prefetch = 0 : i64, scratch_operands = 0 : i64, tpu.core_type = #tpu.core_type<tc>, window_params = [{transform_indices = @transform_0, window_bounds = array<i64: 8, 256>}, {transform_indices = @transform_1, window_bounds = array<i64: 8, 1>}, {pipeline_mode = #tpu.pipeline_mode<synchronous>, transform_indices = @transform_2, window_bounds = array<i64: 256, 256>}, {pipeline_mode = #tpu.pipeline_mode<synchronous>, transform_indices = @transform_3, window_bounds = array<i64: 8, 256>}, {transform_indices = @transform_4, window_bounds = array<i64: 8, 256>}]} {
    %c0 = arith.constant 0 : index
    %c0_0 = arith.constant 0 : index
    %0 = vector.load %arg1[%c0, %c0_0] : memref<8x256xf32, #tpu.memory_space<vmem>>, vector<8x256xf32>
    %1 = arith.truncf %0 : vector<8x256xf32> to vector<8x256xbf16>
    %c0_1 = arith.constant 0 : index
    %c0_2 = arith.constant 0 : index
    %2 = vector.load %arg3[%c0_1, %c0_2] : memref<256x256xbf16, #tpu.memory_space<vmem>>, vector<256x256xbf16>
    %cst = arith.constant dense<0.000000e+00> : vector<8x256xf32>
    %3 = tpu.matmul %1, %2, %cst {dimension_numbers = #tpu.dot_dimension_numbers<[1], [0], [0], [1], [0, 0, 1, 1], [], []>} : vector<8x256xbf16>, vector<256x256xbf16>, vector<8x256xf32> -> vector<8x256xf32>
    %c0_3 = arith.constant 0 : index
    %c0_4 = arith.constant 0 : index
    %4 = vector.load %arg2[%c0_3, %c0_4] : memref<8x1xi32, #tpu.memory_space<vmem>>, vector<8x1xi32>
    %5 = tpu.iota {dimensions = array<i32: 1>} : vector<8x8xi32>
    %6 = vector.broadcast %4 : vector<8x1xi32> to vector<8x8xi32>
    %7 = arith.cmpi eq, %6, %5 : vector<8x8xi32>
    %8 = arith.extui %7 : vector<8x8xi1> to vector<8x8xi32>
    %9 = arith.sitofp %8 : vector<8x8xi32> to vector<8x8xf32>
    %10 = arith.truncf %9 : vector<8x8xf32> to vector<8x8xbf16>
    %c0_5 = arith.constant 0 : index
    %c0_6 = arith.constant 0 : index
    %11 = vector.load %arg4[%c0_5, %c0_6] : memref<8x256xbf16, #tpu.memory_space<vmem>>, vector<8x256xbf16>
    %cst_7 = arith.constant dense<0.000000e+00> : vector<8x256xf32>
    %12 = tpu.matmul %10, %11, %cst_7 {dimension_numbers = #tpu.dot_dimension_numbers<[1], [0], [0], [1], [0, 0, 1, 1], [], []>} : vector<8x8xbf16>, vector<8x256xbf16>, vector<8x256xf32> -> vector<8x256xf32>
    %13 = arith.addf %3, %12 : vector<8x256xf32>
    %cst_8 = arith.constant 0.000000e+00 : f32
    %14 = vector.broadcast %cst_8 : f32 to vector<8x256xf32>
    %15 = arith.maximumf %13, %14 : vector<8x256xf32>
    %c0_9 = arith.constant 0 : index
    %c0_10 = arith.constant 0 : index
    %16 = vector.load %arg5[%c0_9, %c0_10] : memref<8x256xf32, #tpu.memory_space<vmem>>, vector<8x256xf32>
    tpu.vector_store %arg5[%c0_9, %c0_10], %15 {strides = array<i32>} : memref<8x256xf32, #tpu.memory_space<vmem>>, vector<8x256xf32>,
    return
  }
  func.func @transform_0(%arg0: i32) -> (i32, i32) {
    %c0_i32 = arith.constant 0 : i32
    %c0_i32_0 = arith.constant 0 : i32
    return %arg0, %c0_i32 : i32, i32
  }
  func.func @transform_1(%arg0: i32) -> (i32, i32) {
    %c0_i32 = arith.constant 0 : i32
    %c0_i32_0 = arith.constant 0 : i32
    return %arg0, %c0_i32 : i32, i32
  }
  func.func @transform_2(%arg0: i32) -> (i32, i32) {
    %c0_i32 = arith.constant 0 : i32
    %c0_i32_0 = arith.constant 0 : i32
    %c0_i32_1 = arith.constant 0 : i32
    return %c0_i32, %c0_i32_0 : i32, i32
  }
  func.func @transform_3(%arg0: i32) -> (i32, i32) {
    %c0_i32 = arith.constant 0 : i32
    %c0_i32_0 = arith.constant 0 : i32
    %c0_i32_1 = arith.constant 0 : i32
    return %c0_i32, %c0_i32_0 : i32, i32
  }
  func.func @transform_4(%arg0: i32) -> (i32, i32) {
    %c0_i32 = arith.constant 0 : i32
    %c0_i32_0 = arith.constant 0 : i32
    return %arg0, %c0_i32 : i32, i32
  }
}

</mosaic_0001>

<llo_original>
// kernel: meta_conditioning_forward.1
$region0: #{meta_conditioning_forward.1}
  #allocation0 [shape = 'u32[]', space=smem, size = 0x4, offset = 0x4, fixed_abs, tag = 'smem constant byte address 0x4 - core index']
  #allocation1 [shape = 'u32[144,128]{1,0:T(1,128)}', space=vmem, size = 0x12000, scoped, tag = 'internal scratch']
  %s0 = inlined_call_operand.vmem [shape: f32[8,256], index: 0, kind: input, shape index: {}]
  %s1 = inlined_call_operand.vmem [shape: s32[8,1], index: 1, kind: input, shape index: {}]
  %s2 = inlined_call_operand.hbm [shape: bf16[256,256], index: 2, kind: input, shape index: {}]
  %s3 = inlined_call_operand.vmem [shape: bf16[8,256], index: 3, kind: input, shape index: {}]
  %s4 = inlined_call_operand.hbm [shape: f32[8,256], index: 4, kind: output, shape index: {}]
  %s5 = sld [smem:[#allocation0]]
  $region30: #{meta_conditioning_forward.1} parent=0
    _
  %s7 = ssub.s32 1, %s5
  %s8 = scalar_select 0, %s7, %s5
  $region1: #{meta_conditioning_forward.1} parent=0
    #allocation2 [shape = 'u8[131072]{0}', space=vmem, size = 0x20000, scoped, tag = 'input window, operand 2, single buffered']
    #allocation3 [shape = 's32[1]{0}', space=sflag, size = 0x4, scoped, tag = 'scoped memory for meta_conditioning_forward.1']
    #allocation4 [shape = 's32[1]{0}', space=sflag, size = 0x4, scoped, tag = 'scoped memory for meta_conditioning_forward.1']
    #allocation5 [shape = 'u8[8192]{0}', space=vmem, size = 0x2000, scoped, tag = 'output window, operand 0, single buffered']
    %9 = vsyncpa [#allocation3], 0
    %10 = vsyncpa [#allocation4], 0
    // Predicated region
    $region2: #{meta_conditioning_forward.1} parent=1 // pred_check
      _
    $region3: #{meta_conditioning_forward.1} parent=1 // pred_check_branch
      %12 = sbr.rel (0) target = $region5
    $region4: #{meta_conditioning_forward.1} parent=1 // pred_region
      _
    $region5: #{meta_conditioning_forward.1} parent=1 // pred_fallthru
      _
    // Predicated region
    $region6: #{meta_conditioning_forward.1} parent=1 // pred_check
      _
    $region7: #{meta_conditioning_forward.1} parent=1 // pred_check_branch
      %14 = sbr.rel (0) target = $region9
    $region8: #{meta_conditioning_forward.1} parent=1 // pred_region
      _
    $region9: #{meta_conditioning_forward.1} parent=1 // pred_fallthru
      _
    // Predicated region
    $region10: #{meta_conditioning_forward.1} parent=1 // pred_check
      _
    $region11: #{meta_conditioning_forward.1} parent=1 // pred_check_branch
      %16 = sbr.rel (0) target = $region13
    $region12: #{meta_conditioning_forward.1} parent=1 // pred_region
      %s18 = ssub.s32 4096, 4096
      %19 = vsyncadd [#allocation3], %s18
      %s20 = sshll.u32 [#allocation2], 4
      %s21 = int_to_ptr.vmem [resolvable:$true] %s20
      %26 = dma.hbm_to_vmem [thread:$0]  %s2, 4096, %s21, [#allocation3], 128, 128, 8
    $region13: #{meta_conditioning_forward.1} parent=1 // pred_fallthru
      _
    // Predicated region
    $region14: #{meta_conditioning_forward.1} parent=1 // pred_check
      _
    $region15: #{meta_conditioning_forward.1} parent=1 // pred_check_branch
      %28 = sbr.rel (0) target = $region17
    $region16: #{meta_conditioning_forward.1} parent=1 // pred_region
      _
    $region17: #{meta_conditioning_forward.1} parent=1 // pred_fallthru
      _
    // Predicated region
    $region18: #{meta_conditioning_forward.1} parent=1 // pred_check
      _
    $region19: #{meta_conditioning_forward.1} parent=1 // pred_check_branch
      %30 = sbr.rel (0) target = $region21
    $region20: #{meta_conditioning_forward.1} parent=1 // pred_region
      %31 = dma.done [#allocation3], 4096
    $region21: #{meta_conditioning_forward.1} parent=1 // pred_fallthru
      _
    %v33 = vld [vmem:[%s0] sm:$0xff]
    %v34 = vld [vmem:[%s0 + $0x8] sm:$0xff]
    %v35 = vpack.c.bf16 %v33, %v33
    %v36 = vpack.c.bf16 %v34, %v34
    %v37 = vld [vmem:[#allocation2] sm:$0xff]
    %v38 = vld [vmem:[#allocation2 + $0x8] sm:$0xff]
    %v39 = vld [vmem:[#allocation2 + $0x10] sm:$0xff]
    %v40 = vld [vmem:[#allocation2 + $0x18] sm:$0xff]
    %v41 = vld [vmem:[#allocation2 + $0x20] sm:$0xff]
    %v42 = vld [vmem:[#allocation2 + $0x28] sm:$0xff]
    %v43 = vld [vmem:[#allocation2 + $0x30] sm:$0xff]
    %v44 = vld [vmem:[#allocation2 + $0x38] sm:$0xff]
    %v45 = vld [vmem:[#allocation2 + $0x40] sm:$0xff]
    %v46 = vld [vmem:[#allocation2 + $0x48] sm:$0xff]
    %v47 = vld [vmem:[#allocation2 + $0x50] sm:$0xff]
    %v48 = vld [vmem:[#allocation2 + $0x58] sm:$0xff]
    %v49 = vld [vmem:[#allocation2 + $0x60] sm:$0xff]
    %v50 = vld [vmem:[#allocation2 + $0x68] sm:$0xff]
    %v51 = vld [vmem:[#allocation2 + $0x70] sm:$0xff]
    %v52 = vld [vmem:[#allocation2 + $0x78] sm:$0xff]
    %v53 = vld [vmem:[#allocation2 + $0x80] sm:$0xff]
    %v54 = vld [vmem:[#allocation2 + $0x88] sm:$0xff]
    %v55 = vld [vmem:[#allocation2 + $0x90] sm:$0xff]
    %v56 = vld [vmem:[#allocation2 + $0x98] sm:$0xff]
    %v57 = vld [vmem:[#allocation2 + $0xa0] sm:$0xff]
    %v58 = vld [vmem:[#allocation2 + $0xa8] sm:$0xff]
    %v59 = vld [vmem:[#allocation2 + $0xb0] sm:$0xff]
    %v60 = vld [vmem:[#allocation2 + $0xb8] sm:$0xff]
    %v61 = vld [vmem:[#allocation2 + $0xc0] sm:$0xff]
    %v62 = vld [vmem:[#allocation2 + $0xc8] sm:$0xff]
    %v63 = vld [vmem:[#allocation2 + $0xd0] sm:$0xff]
    %v64 = vld [vmem:[#allocation2 + $0xd8] sm:$0xff]
    %v65 = vld [vmem:[#allocation2 + $0xe0] sm:$0xff]
    %v66 = vld [vmem:[#allocation2 + $0xe8] sm:$0xff]
    %v67 = vld [vmem:[#allocation2 + $0xf0] sm:$0xff]
    %v68 = vld [vmem:[#allocation2 + $0xf8] sm:$0xff]
    %v69 = vld [vmem:[%s1] sm:$0xff]
    %v70 = vlaneseq
    %v71 = vand.u32 %v70, 127
    %72 = vset.pattern.permute.xlu0 0
    %73 = vperm.xlu0 %72, %v69
    %v74 = vpop.permute.xlu0 %73
    %vm75 = vcmp.eq.s32.totalorder %v74, %v71
    %v76 = vsel %vm75, 1, 0
    %v77 = vcvt.s32.f32 %v76
    %v78 = vpack.c.bf16 %v77, %v77
    %v79 = vld [vmem:[%s3] sm:$0xff]
    %v81 = vunpack.c.l.b16 %v79
    %v82 = vunpack.c.h.b16 %v79
    %v83 = vpack.c.b16 %v81, %v81
    %v84 = vpack.c.b16 %v82, %v82
    %vm85 = vcmask 64512
    %v87 = vsel %vm85, %v78, 0
    %vm89 = vcmask 1043456
    %v91 = vsel %vm89, %v83, 0
    %v94 = vsel %vm89, %v84, 0
    %96 = vmatprep.subr.bf16.mxu0 %v94
    %97 = vmatpush1.bf16.msra.mxu0 %v91
    %98 = vmatprep.subr.bf16.mxu0 0
    %99 = vmatpush1.bf16.msra.mxu0 0
    %100 = vmatprep.subr.bf16.mxu0 0
    %101 = vmatpush1.bf16.msra.mxu0 0
    %102 = vmatprep.subr.bf16.mxu0 0
    %103 = vmatpush1.bf16.msra.mxu0 0
    %104 = vmatprep.subr.bf16.mxu0 0
    %105 = vmatpush1.bf16.msra.mxu0 0
    %106 = vmatprep.subr.bf16.mxu0 0
    %107 = vmatpush1.bf16.msra.mxu0 0
    %108 = vmatprep.subr.bf16.mxu0 0
    %109 = vmatpush1.bf16.msra.mxu0 0
    %110 = vmatprep.subr.bf16.mxu0 0
    %111 = vmatpush1.bf16.msra.mxu0 0
    %112 = vmatprep.subr.bf16.mxu0 0
    %113 = vmatpush1.bf16.msra.mxu0 0
    %114 = vmatprep.subr.bf16.mxu0 0
    %115 = vmatpush1.bf16.msra.mxu0 0
    %116 = vmatprep.subr.bf16.mxu0 0
    %117 = vmatpush1.bf16.msra.mxu0 0
    %118 = vmatprep.subr.bf16.mxu0 0
    %119 = vmatpush1.bf16.msra.mxu0 0
    %120 = vmatprep.subr.bf16.mxu0 0
    %121 = vmatpush1.bf16.msra.mxu0 0
    %122 = vmatprep.subr.bf16.mxu0 0
    %123 = vmatpush1.bf16.msra.mxu0 0
    %124 = vmatprep.subr.bf16.mxu0 0
    %125 = vmatpush1.bf16.msra.mxu0 0
    %126 = vmatprep.subr.bf16.mxu0 0
    %127 = vmatpush1.bf16.msra.mxu0 0
    %128 = vmatprep.mubr.bf16.mxu0 0
    %129 = vmatmul.mubr.bf16.gmra.mrb[0].mxu0 %v87
    %v130 = vpop.f32.mrb[0].mxu0
    %v131 = vadd.f32 0.0, %v130
    %v132 = vpop.f32.mrb[0].mxu0
    %v133 = vadd.f32 0.0, %v132
    %v134 = vpop.f32.mrb[0].mxu0
    %v135 = vpop.f32.mrb[0].mxu0
    %136 = vdwg.mxu0
    %v169 = vunpack.c.l.b16 %v37
    %v170 = vunpack.c.h.b16 %v37
    %v171 = vunpack.c.l.b16 %v38
    %v172 = vunpack.c.h.b16 %v38
    %v173 = vunpack.c.l.b16 %v39
    %v174 = vunpack.c.h.b16 %v39
    %v175 = vunpack.c.l.b16 %v40
    %v176 = vunpack.c.h.b16 %v40
    %v177 = vunpack.c.l.b16 %v41
    %v178 = vunpack.c.h.b16 %v41
    %v179 = vunpack.c.l.b16 %v42
    %v180 = vunpack.c.h.b16 %v42
    %v181 = vunpack.c.l.b16 %v43
    %v182 = vunpack.c.h.b16 %v43
    %v183 = vunpack.c.l.b16 %v44
    %v184 = vunpack.c.h.b16 %v44
    %v185 = vunpack.c.l.b16 %v45
    %v186 = vunpack.c.h.b16 %v45
    %v187 = vunpack.c.l.b16 %v46
    %v188 = vunpack.c.h.b16 %v46
    %v189 = vunpack.c.l.b16 %v47
    %v190 = vunpack.c.h.b16 %v47
    %v191 = vunpack.c.l.b16 %v48
    %v192 = vunpack.c.h.b16 %v48
    %v193 = vunpack.c.l.b16 %v49
    %v194 = vunpack.c.h.b16 %v49
    %v195 = vunpack.c.l.b16 %v50
    %v196 = vunpack.c.h.b16 %v50
    %v197 = vunpack.c.l.b16 %v51
    %v198 = vunpack.c.h.b16 %v51
    %v199 = vunpack.c.l.b16 %v52
    %v200 = vunpack.c.h.b16 %v52
    %v201 = vunpack.c.l.b16 %v53
    %v202 = vunpack.c.h.b16 %v53
    %v203 = vunpack.c.l.b16 %v54
    %v204 = vunpack.c.h.b16 %v54
    %v205 = vunpack.c.l.b16 %v55
    %v206 = vunpack.c.h.b16 %v55
    %v207 = vunpack.c.l.b16 %v56
    %v208 = vunpack.c.h.b16 %v56
    %v209 = vunpack.c.l.b16 %v57
    %v210 = vunpack.c.h.b16 %v57
    %v211 = vunpack.c.l.b16 %v58
    %v212 = vunpack.c.h.b16 %v58
    %v213 = vunpack.c.l.b16 %v59
    %v214 = vunpack.c.h.b16 %v59
    %v215 = vunpack.c.l.b16 %v60
    %v216 = vunpack.c.h.b16 %v60
    %v217 = vunpack.c.l.b16 %v61
    %v218 = vunpack.c.h.b16 %v61
    %v219 = vunpack.c.l.b16 %v62
    %v220 = vunpack.c.h.b16 %v62
    %v221 = vunpack.c.l.b16 %v63
    %v222 = vunpack.c.h.b16 %v63
    %v223 = vunpack.c.l.b16 %v64
    %v224 = vunpack.c.h.b16 %v64
    %v225 = vunpack.c.l.b16 %v65
    %v226 = vunpack.c.h.b16 %v65
    %v227 = vunpack.c.l.b16 %v66
    %v228 = vunpack.c.h.b16 %v66
    %v229 = vunpack.c.l.b16 %v67
    %v230 = vunpack.c.h.b16 %v67
    %v231 = vunpack.c.l.b16 %v68
    %v232 = vunpack.c.h.b16 %v68
    %v233 = vpack.c.b16 %v171, %v169
    %v234 = vpack.c.b16 %v172, %v170
    %v235 = vpack.c.b16 %v175, %v173
    %v236 = vpack.c.b16 %v176, %v174
    %v237 = vpack.c.b16 %v179, %v177
    %v238 = vpack.c.b16 %v180, %v178
    %v239 = vpack.c.b16 %v183, %v181
    %v240 = vpack.c.b16 %v184, %v182
    %v241 = vpack.c.b16 %v187, %v185
    %v242 = vpack.c.b16 %v188, %v186
    %v243 = vpack.c.b16 %v191, %v189
    %v244 = vpack.c.b16 %v192, %v190
    %v245 = vpack.c.b16 %v195, %v193
    %v246 = vpack.c.b16 %v196, %v194
    %v247 = vpack.c.b16 %v199, %v197
    %v248 = vpack.c.b16 %v200, %v198
    %v249 = vpack.c.b16 %v203, %v201
    %v250 = vpack.c.b16 %v204, %v202
    %v251 = vpack.c.b16 %v207, %v205
    %v252 = vpack.c.b16 %v208, %v206
    %v253 = vpack.c.b16 %v211, %v209
    %v254 = vpack.c.b16 %v212, %v210
    %v255 = vpack.c.b16 %v215, %v213
    %v256 = vpack.c.b16 %v216, %v214
    %v257 = vpack.c.b16 %v219, %v217
    %v258 = vpack.c.b16 %v220, %v218
    %v259 = vpack.c.b16 %v223, %v221
    %v260 = vpack.c.b16 %v224, %v222
    %v261 = vpack.c.b16 %v227, %v225
    %v262 = vpack.c.b16 %v228, %v226
    %v263 = vpack.c.b16 %v231, %v229
    %v264 = vpack.c.b16 %v232, %v230
    %297 = vmatprep.subr.bf16.mxu0 %v234
    %298 = vmatpush1.bf16.msra.mxu0 %v233
    %299 = vmatprep.subr.bf16.mxu0 %v236
    %300 = vmatpush1.bf16.msra.mxu0 %v235
    %301 = vmatprep.subr.bf16.mxu0 %v238
    %302 = vmatpush1.bf16.msra.mxu0 %v237
    %303 = vmatprep.subr.bf16.mxu0 %v240
    %304 = vmatpush1.bf16.msra.mxu0 %v239
    %305 = vmatprep.subr.bf16.mxu0 %v242
    %306 = vmatpush1.bf16.msra.mxu0 %v241
    %307 = vmatprep.subr.bf16.mxu0 %v244
    %308 = vmatpush1.bf16.msra.mxu0 %v243
    %309 = vmatprep.subr.bf16.mxu0 %v246
    %310 = vmatpush1.bf16.msra.mxu0 %v245
    %311 = vmatprep.subr.bf16.mxu0 %v248
    %312 = vmatpush1.bf16.msra.mxu0 %v247
    %313 = vmatprep.subr.bf16.mxu0 %v250
    %314 = vmatpush1.bf16.msra.mxu0 %v249
    %315 = vmatprep.subr.bf16.mxu0 %v252
    %316 = vmatpush1.bf16.msra.mxu0 %v251
    %317 = vmatprep.subr.bf16.mxu0 %v254
    %318 = vmatpush1.bf16.msra.mxu0 %v253
    %319 = vmatprep.subr.bf16.mxu0 %v256
    %320 = vmatpush1.bf16.msra.mxu0 %v255
    %321 = vmatprep.subr.bf16.mxu0 %v258
    %322 = vmatpush1.bf16.msra.mxu0 %v257
    %323 = vmatprep.subr.bf16.mxu0 %v260
    %324 = vmatpush1.bf16.msra.mxu0 %v259
    %325 = vmatprep.subr.bf16.mxu0 %v262
    %326 = vmatpush1.bf16.msra.mxu0 %v261
    %327 = vmatprep.subr.bf16.mxu0 %v264
    %328 = vmatpush1.bf16.msra.mxu0 %v263
    %329 = vmatprep.mubr.bf16.mxu0 %v36
    %330 = vmatmul.mubr.bf16.gmra.mrb[0].mxu0 %v35
    %v331 = vpop.f32.mrb[0].mxu0
    %v332 = vadd.f32 %v131, %v331
    %v333 = vpop.f32.mrb[0].mxu0
    %v334 = vadd.f32 %v133, %v333
    %v335 = vpop.f32.mrb[0].mxu0
    %v336 = vpop.f32.mrb[0].mxu0
    %337 = vdwg.mxu0
    %v338 = vmax.f32 %v332, 0.0
    %v339 = vmax.f32 %v334, 0.0
    %340 = vst [vmem:[#allocation5] sm:$0xff] %v338
    %341 = vst [vmem:[#allocation5 + $0x8] sm:$0xff] %v339
    // Predicated region
    $region22: #{meta_conditioning_forward.1} parent=1 // pred_check
      _
    $region23: #{meta_conditioning_forward.1} parent=1 // pred_check_branch
      %343 = sbr.rel (0) target = $region25
    $region24: #{meta_conditioning_forward.1} parent=1 // pred_region
      %s345 = ssub.s32 256, 256
      %346 = vsyncadd [#allocation4], %s345
      %s348 = sshll.u32 [#allocation5], 4
      %s349 = int_to_ptr.vmem [resolvable:$true] %s348
      %351 = dma.vmem_to_hbm [thread:$0]  %s349, 256, %s4, [#allocation4]
    $region25: #{meta_conditioning_forward.1} parent=1 // pred_fallthru
      _
    // Predicated region
    $region26: #{meta_conditioning_forward.1} parent=1 // pred_check
      _
    $region27: #{meta_conditioning_forward.1} parent=1 // pred_check_branch
      %353 = sbr.rel (0) target = $region29
    $region28: #{meta_conditioning_forward.1} parent=1 // pred_region
      %354 = dma.done [#allocation4], 256
    $region29: #{meta_conditioning_forward.1} parent=1 // pred_fallthru
      _
    %355 = vsyncpa [#allocation3], 1
    %356 = vsyncpa [#allocation4], 1

</llo_original>
